<compile_context>
chip_gen: v6e
topology: v6e:2x2x1
jax: 0.10.0
libtpu: 0.0.40
codegen_flags: <defaults>
</compile_context>

<pallas_src>
import functools

import jax
import jax.numpy as jnp
import numpy as np
from jax import lax
from jax.experimental import pallas as pl
from jax.experimental.pallas import tpu as pltpu


def _round_up(x: int, m: int) -> int:
    return ((x + m - 1) // m) * m


def _pick_queries_per_tile(B: int, N: int, target_rows: int = 512) -> int:
    """Queries per row tile: must divide B and keep all blocks (8, lane)-legal."""
    upper = max(1, min(B, target_rows // max(N, 1)))
    for qpt in range(upper, 0, -1):
        if B % qpt == 0 and (qpt == B or qpt % 8 == 0):
            return qpt
    return B           # single row tile: block == full array is always legal


def _softplus(x):
    # numerically stable softplus, f32 elementwise (VPU + EUP)
    return jnp.maximum(x, 0.0) + jnp.log(1.0 + jnp.exp(-jnp.abs(x)))


# ---------------------------------------------------------------------------
# Kernel 1: late-interaction score matrix
#   scores[b, c] = sum_n max_s <q[b, n, :], d[c, s, :]>
# Grid = (query-row tiles [parallel], docs [arbitrary, last]).
# ---------------------------------------------------------------------------
def _scores_kernel(q_ref, d_ref, scores_ref, maxed_ref, *, n_tok_q, n_docs, s_true):
    c = pl.program_id(1)                       # which doc this step covers

    @pl.when(c == 0)
    def _init():
        maxed_ref[...] = jnp.zeros_like(maxed_ref)

    # One lane-dense MXU matmul per (row tile, doc); contract trailing D of both
    # operands (A @ B^T dimension numbers, no wrapper-side transpose).
    sim = lax.dot_general(
        q_ref[...], d_ref[...],
        dimension_numbers=(((1,), (1,)), ((), ())),
        preferred_element_type=jnp.float32,
    )                                           # (TILE_M, S_pad) f32
    if s_true != sim.shape[1]:                  # static: doc tokens were padded
        lane = lax.broadcasted_iota(jnp.int32, sim.shape, 1)
        sim = jnp.where(lane < s_true, sim, jnp.float32(-1e30))

    # Doc-max folded into the grid step; scatter into column c of the running
    # (TILE_M, n_docs) scratch via an iota select (no dynamic lane-dim store).
    row_max = jnp.max(sim, axis=1, keepdims=True)                    # (TILE_M, 1)
    col = lax.broadcasted_iota(jnp.int32, maxed_ref.shape, 1)
    maxed_ref[...] = jnp.where(col == c, row_max, maxed_ref[...])

    # Epilogue on the last doc: sum over the N query tokens, write this row
    # tile's (Bq_tile, B) block of the score matrix.
    @pl.when(c == n_docs - 1)
    def _epilogue():
        m = maxed_ref[...]                                           # (TILE_M, B)
        tile_q = m.shape[0] // n_tok_q
        scores_ref[...] = m.reshape(tile_q, n_tok_q, n_docs).sum(axis=1)


def _late_interaction_scores(q, d):
    """(B, N, D) x (C, S, D) -> (B, C) ColBERT score matrix via a gridded kernel."""
    B, N, D = q.shape
    C, S, _ = d.shape

    # Layout plumbing (wrapper side, fused by XLA):
    #   * zero-pad D to a multiple of 128 (exact for dot products, full lanes)
    #   * pad doc tokens to a multiple of 8 (masked in-kernel before the max)
    Dp = _round_up(D, 128)
    Sp = _round_up(S, 8)

    q2 = q.reshape(B * N, D)
    if Dp != D:
        q2 = jnp.pad(q2, ((0, 0), (0, Dp - D)))
    dp = d
    if Dp != D:
        dp = jnp.pad(dp, ((0, 0), (0, 0), (0, Dp - D)))
    if Sp != S:
        dp = jnp.pad(dp, ((0, 0), (0, Sp - S), (0, 0)))
    d2 = dp.reshape(C * Sp, Dp)

    qpt = _pick_queries_per_tile(B, N)
    tile_m = qpt * N
    num_m = (B * N) // tile_m

    kernel = functools.partial(_scores_kernel, n_tok_q=N, n_docs=C, s_true=S)
    return pl.pallas_call(
        kernel,
        out_shape=jax.ShapeDtypeStruct((B, C), jnp.float32),
        grid_spec=pltpu.PrefetchScalarGridSpec(
            num_scalar_prefetch=0,
            grid=(num_m, C),
            in_specs=[
                # query rows: invariant in the doc axis -> loaded once per tile
                pl.BlockSpec((tile_m, Dp), lambda i, c: (i, 0)),
                # one doc's tokens per step, double-buffered by BlockSpec
                pl.BlockSpec((Sp, Dp), lambda i, c: (c, 0)),
            ],
            out_specs=pl.BlockSpec((qpt, C), lambda i, c: (i, 0)),
            scratch_shapes=[pltpu.VMEM((tile_m, C), jnp.float32)],
        ),
        compiler_params=pltpu.CompilerParams(
            dimension_semantics=("parallel", "arbitrary")),
    )(q2, d2)


# ---------------------------------------------------------------------------
# Kernel 2: tiny finalize kernel on the (B, B) score matrices.
# ---------------------------------------------------------------------------
def _pos_hard_neg_from_scores(scores):
    B = scores.shape[0]
    row = lax.broadcasted_iota(jnp.int32, (B, B), 0)
    col = lax.broadcasted_iota(jnp.int32, (B, B), 1)
    eye = row == col
    pos = jnp.sum(jnp.where(eye, scores, 0.0), axis=1, keepdims=True)        # (B, 1)
    hard_neg = jnp.max(jnp.where(eye, jnp.float32(-10000.0), scores),
                       axis=1, keepdims=True)                                # (B, 1)
    return pos, hard_neg


def _finalize_eval_kernel(s_ref, out_ref, *, inv_b):
    pos, hn = _pos_hard_neg_from_scores(s_ref[...])
    out_ref[...] = jnp.sum(_softplus(hn - pos), axis=0, keepdims=True) * inv_b


def _finalize_distill_kernel(s_ref, t_ref, out_ref, *, inv_b, alpha):
    pos, hn = _pos_hard_neg_from_scores(s_ref[...])
    tpos, thn = _pos_hard_neg_from_scores(t_ref[...])
    contrastive = jnp.sum(_softplus(hn - pos), axis=0, keepdims=True) * inv_b
    diff = (pos - hn) - (tpos - thn)
    margin_mse = jnp.sum(diff * diff, axis=0, keepdims=True) * inv_b
    out_ref[...] = contrastive + alpha * margin_mse


def _finalize(scores, t_scores=None, *, alpha=0.3):
    B = scores.shape[0]
    vmem = pl.BlockSpec(memory_space=pltpu.MemorySpace.VMEM)
    out_shape = jax.ShapeDtypeStruct((1, 1), jnp.float32)
    if t_scores is None:
        return pl.pallas_call(
            functools.partial(_finalize_eval_kernel, inv_b=1.0 / B),
            out_shape=out_shape, in_specs=[vmem], out_specs=vmem)(scores)
    return pl.pallas_call(
        functools.partial(_finalize_distill_kernel, inv_b=1.0 / B, alpha=float(alpha)),
        out_shape=out_shape, in_specs=[vmem, vmem], out_specs=vmem)(scores, t_scores)


# ---------------------------------------------------------------------------
# Public wrapper: mirrors ColBertMarginMSELoss.forward
# ---------------------------------------------------------------------------
def colbert_margin_mse_loss(query_embeddings, doc_embeddings,
                            teacher_query_outputs=None, teacher_doc_outputs=None,
                            *, alpha=0.3, eval=False):
    B = query_embeddings.shape[0]
    assert doc_embeddings.shape[0] == B, "in-batch negatives: C must equal B"

    scores = _late_interaction_scores(query_embeddings, doc_embeddings)
    if eval or teacher_query_outputs is None:
        out = _finalize(scores)
    else:
        # torch.no_grad parity: no gradients flow into the teacher tensors.
        tq = lax.stop_gradient(teacher_query_outputs)
        td = lax.stop_gradient(teacher_doc_outputs)
        assert tq.shape[0] == B and td.shape[0] == B
        t_scores = lax.stop_gradient(_late_interaction_scores(tq, td))
        out = _finalize(scores, t_scores, alpha=alpha)
    return out[0, 0]


# ---------------------------------------------------------------------------
# Pure-JAX f32 reference (mirror of the PyTorch forward).
# ---------------------------------------------------------------------------
def _reference(q, d, tq=None, td=None, alpha=0.3, eval=False):
    def scores_fn(Q, Dm):
        sim = jnp.einsum('bnd,csd->bcns', Q, Dm)
        return sim.max(axis=3).sum(axis=2)

    B = q.shape[0]
    eye = jnp.eye(B, dtype=bool)
    s = scores_fn(q, d)
    pos = jnp.diagonal(s)
    hn = jnp.where(eye, -10000.0, s).max(axis=1)
    contrastive = jnp.mean(jax.nn.softplus(hn - pos))
    if eval or tq is None:
        return contrastive
    ts = scores_fn(tq, td)
    tpos = jnp.diagonal(ts)
    thn = jnp.where(eye, -10000.0, ts).max(axis=1)
    margin_mse = jnp.mean(((pos - hn) - (tpos - thn)) ** 2)
    return contrastive + alpha * margin_mse


if __name__ == "__main__":
    key = jax.random.PRNGKey(0)
    k1, k2, k3, k4 = jax.random.split(key, 4)

    # Snap inputs onto the bf16 grid so the in-kernel f32 matmul and the XLA
    # f32 reference agree to f32 rounding regardless of each path's internal
    # MXU pass precision (the kernel itself keeps full f32 semantics).
    def bf16_grid(x):
        return x.astype(jnp.bfloat16).astype(jnp.float32)

    B, N, S, D = 4, 8, 16, 32          # batch, query tokens, doc tokens, hidden
    q = bf16_grid(jax.random.normal(k1, (B, N, D), jnp.float32))
    d = bf16_grid(jax.random.normal(k2, (B, S, D), jnp.float32))
    tq = bf16_grid(jax.random.normal(k3, (B, N, D), jnp.float32))
    td = bf16_grid(jax.random.normal(k4, (B, S, D), jnp.float32))

    # 1) full distillation loss
    loss = colbert_margin_mse_loss(q, d, tq, td, alpha=0.3)
    jax.block_until_ready(loss)
    ref = _reference(q, d, tq, td, alpha=0.3)
    assert np.allclose(np.asarray(loss), np.asarray(ref), rtol=2e-3, atol=2e-3), (loss, ref)

    # 2) eval / contrastive-only path
    loss_eval = colbert_margin_mse_loss(q, d, eval=True)
    jax.block_until_ready(loss_eval)
    ref_eval = _reference(q, d, eval=True)
    assert np.allclose(np.asarray(loss_eval), np.asarray(ref_eval),
                       rtol=2e-3, atol=2e-3), (loss_eval, ref_eval)

    # 3) B == 1 edge case (hard-neg masked max returns -10000, like masked_fill)
    loss_b1 = colbert_margin_mse_loss(q[:1], d[:1], eval=True)
    jax.block_until_ready(loss_b1)
    ref_b1 = _reference(q[:1], d[:1], eval=True)
    assert np.allclose(np.asarray(loss_b1), np.asarray(ref_b1),
                       rtol=2e-3, atol=2e-3), (loss_b1, ref_b1)

    # 4) multiple query-row tiles + padded S + padded D (exercises the 2-D grid)
    B2, N2, S2, D2 = 16, 64, 20, 32
    q_big = bf16_grid(jax.random.normal(k3, (B2, N2, D2), jnp.float32))
    d_big = bf16_grid(jax.random.normal(k4, (B2, S2, D2), jnp.float32))
    loss_big = colbert_margin_mse_loss(q_big, d_big, eval=True)
    jax.block_until_ready(loss_big)
    ref_big = _reference(q_big, d_big, eval=True)
    assert np.allclose(np.asarray(loss_big), np.asarray(ref_big),
                       rtol=2e-3, atol=2e-3), (loss_big, ref_big)

    print("KERNEL_OK")
</pallas_src>

<mosaic_0001>
module attributes {stable_mosaic.version = 11 : i64} {
  func.func @_scores_kernel(%arg0: i32, %arg1: i32, %arg2: memref<32x128xf32, #tpu.memory_space<vmem>>, %arg3: memref<16x128xf32, #tpu.memory_space<vmem>>, %arg4: memref<4x4xf32, #tpu.memory_space<vmem>>, %arg5: memref<32x4xf32, #tpu.memory_space<vmem>>) attributes {dimension_semantics = [#tpu.dimension_semantics<parallel>, #tpu.dimension_semantics<arbitrary>], iteration_bounds = array<i64: 1, 4>, scalar_prefetch = 0 : i64, scratch_operands = 1 : i64, tpu.core_type = #tpu.core_type<tc>, window_params = [{transform_indices = @transform_0, window_bounds = array<i64: 32, 128>}, {transform_indices = @transform_1, window_bounds = array<i64: 16, 128>}, {transform_indices = @transform_2, window_bounds = array<i64: 4, 4>}]} {
    %c0_i32 = arith.constant 0 : i32
    %0 = arith.cmpi eq, %arg1, %c0_i32 : i32
    %1 = arith.extui %0 : i1 to i32
    %c0_i32_0 = arith.constant 0 : i32
    %2 = arith.cmpi ne, %1, %c0_i32_0 : i32
    scf.if %2 {
      %cst_10 = arith.constant 0.000000e+00 : f32
      %19 = vector.broadcast %cst_10 : f32 to vector<32x4xf32>
      %c0_11 = arith.constant 0 : index
      %c0_12 = arith.constant 0 : index
      %20 = vector.load %arg5[%c0_11, %c0_12] : memref<32x4xf32, #tpu.memory_space<vmem>>, vector<32x4xf32>
      tpu.vector_store %arg5[%c0_11, %c0_12], %19 {strides = array<i32>} : memref<32x4xf32, #tpu.memory_space<vmem>>, vector<32x4xf32>,
    } else {
    }
    %c0 = arith.constant 0 : index
    %c0_1 = arith.constant 0 : index
    %3 = vector.load %arg2[%c0, %c0_1] : memref<32x128xf32, #tpu.memory_space<vmem>>, vector<32x128xf32>
    %c0_2 = arith.constant 0 : index
    %c0_3 = arith.constant 0 : index
    %4 = vector.load %arg3[%c0_2, %c0_3] : memref<16x128xf32, #tpu.memory_space<vmem>>, vector<16x128xf32>
    %cst = arith.constant dense<0.000000e+00> : vector<32x16xf32>
    %5 = tpu.matmul %3, %4, %cst {dimension_numbers = #tpu.dot_dimension_numbers<[1], [1], [0], [0], [0, 0, 1, 0], [], []>} : vector<32x128xf32>, vector<16x128xf32>, vector<32x16xf32> -> vector<32x16xf32>
    %cst_4 = arith.constant dense<0xFF800000> : vector<32xf32>
    %6 = vector.multi_reduction <maximumf>, %5, %cst_4 [1] : vector<32x16xf32> to vector<32xf32>
    %7 = vector.shape_cast %6 : vector<32xf32> to vector<32x1xf32>
    %8 = tpu.iota {dimensions = array<i32: 1>} : vector<32x4xi32>
    %9 = vector.broadcast %arg1 : i32 to vector<32x4xi32>
    %10 = arith.cmpi eq, %8, %9 : vector<32x4xi32>
    %c0_5 = arith.constant 0 : index
    %c0_6 = arith.constant 0 : index
    %11 = vector.load %arg5[%c0_5, %c0_6] : memref<32x4xf32, #tpu.memory_space<vmem>>, vector<32x4xf32>
    %12 = vector.shape_cast %7 : vector<32x1xf32> to vector<32x1xf32>
    %13 = vector.broadcast %12 : vector<32x1xf32> to vector<32x4xf32>
    %14 = arith.select %10, %13, %11 : vector<32x4xi1>, vector<32x4xf32>
    %c0_7 = arith.constant 0 : index
    %c0_8 = arith.constant 0 : index
    %15 = vector.load %arg5[%c0_7, %c0_8] : memref<32x4xf32, #tpu.memory_space<vmem>>, vector<32x4xf32>
    tpu.vector_store %arg5[%c0_7, %c0_8], %14 {strides = array<i32>} : memref<32x4xf32, #tpu.memory_space<vmem>>, vector<32x4xf32>,
    %c3_i32 = arith.constant 3 : i32
    %16 = arith.cmpi eq, %arg1, %c3_i32 : i32
    %17 = arith.extui %16 : i1 to i32
    %c0_i32_9 = arith.constant 0 : i32
    %18 = arith.cmpi ne, %17, %c0_i32_9 : i32
    scf.if %18 {
      %c0_10 = arith.constant 0 : index
      %c0_11 = arith.constant 0 : index
      %19 = vector.load %arg5[%c0_10, %c0_11] : memref<32x4xf32, #tpu.memory_space<vmem>>, vector<32x4xf32>
      %20 = vector.shape_cast %19 : vector<32x4xf32> to vector<4x8x4xf32>
      %cst_12 = arith.constant dense<0.000000e+00> : vector<4x4xf32>
      %21 = vector.multi_reduction <add>, %20, %cst_12 [1] : vector<4x8x4xf32> to vector<4x4xf32>
      %c0_13 = arith.constant 0 : index
      %c0_14 = arith.constant 0 : index
      %22 = vector.load %arg4[%c0_13, %c0_14] : memref<4x4xf32, #tpu.memory_space<vmem>>, vector<4x4xf32>
      tpu.vector_store %arg4[%c0_13, %c0_14], %21 {strides = array<i32>} : memref<4x4xf32, #tpu.memory_space<vmem>>, vector<4x4xf32>,
    } else {
    }
    return
  }
  func.func @transform_0(%arg0: i32, %arg1: i32) -> (i32, i32) {
    %c0_i32 = arith.constant 0 : i32
    %c0_i32_0 = arith.constant 0 : i32
    return %arg0, %c0_i32 : i32, i32
  }
  func.func @transform_1(%arg0: i32, %arg1: i32) -> (i32, i32) {
    %c0_i32 = arith.constant 0 : i32
    %c0_i32_0 = arith.constant 0 : i32
    return %arg1, %c0_i32 : i32, i32
  }
  func.func @transform_2(%arg0: i32, %arg1: i32) -> (i32, i32) {
    %c0_i32 = arith.constant 0 : i32
    %c0_i32_0 = arith.constant 0 : i32
    return %arg0, %c0_i32 : i32, i32
  }
}

</mosaic_0001>

<llo_original>
// kernel: tpu_custom_call.1
$region0: #{tpu_custom_call.1}
  #allocation0 [shape = 'u32[]', space=smem, size = 0x4, offset = 0x4, fixed_abs, tag = 'smem constant byte address 0x4 - core index']
  #allocation1 [shape = 'u32[144,128]{1,0:T(1,128)}', space=vmem, size = 0x12000, scoped, tag = 'internal scratch']
  #allocation2 [shape = 'f32[32,4]{1,0:T(8,128)}', space=vmem, size = 0x4000, scoped, tag = 'scratch operand']
  %s0 = inlined_call_operand.hbm [shape: f32[32,128], index: 0, kind: input, shape index: {}]
  %s1 = inlined_call_operand.hbm [shape: f32[64,128], index: 1, kind: input, shape index: {}]
  %s2 = inlined_call_operand.hbm [shape: f32[4,4], index: 2, kind: output, shape index: {}]
  %s3 = sld [smem:[#allocation0]]
  $region57: #{tpu_custom_call.1} parent=0
    _
  %s5 = ssub.s32 1, %s3
  %s6 = scalar_select 0, %s5, %s3
  $region1: #{tpu_custom_call.1} parent=0
    #allocation3 [shape = 'u8[16384]{0}', space=vmem, size = 0x4000, scoped, tag = 'input window, operand 0, single buffered']
    #allocation4 [shape = 's32[2]{0}', space=sflag, size = 0x8, scoped, tag = 'scoped memory for tpu_custom_call.1']
    #allocation5 [shape = 's32[2]{0}', space=sflag, size = 0x8, scoped, tag = 'scoped memory for tpu_custom_call.1']
    #allocation6 [shape = 'u8[16384]{0}', space=vmem, size = 0x4000, scoped, tag = 'input window, operand 1']
    #allocation7 [shape = 's32[2]{0}', space=sflag, size = 0x8, scoped, tag = 'scoped memory for tpu_custom_call.1']
    #allocation8 [shape = 'u8[2048]{0}', space=vmem, size = 0x800, scoped, tag = 'output window, operand 0, single buffered']
    %7 = vsyncpa [#allocation4], 0
    %8 = vsyncpa [#allocation7], 0
    %s9 = scalar_lea.sflag [#allocation7], 1
    %10 = vsyncpa %s9, 0
    %11 = vsyncpa [#allocation5], 0
    loop: start=0, step=1, limit=6
    $region2: #{tpu_custom_call.1} parent=1 // loop_pre_header
      _
    $region3: #{tpu_custom_call.1} parent=1 // loop_header
      %s13 = sphi 0, %s17
      %p14 = scmp.ge.s32.totalorder %s13, 6
      %s20 = sphi 0, %s32
      %s21 = sphi 0, %s28
      %s22 = sphi 0, %s20
      %s23 = sphi 0, %s21
      %s24 = sphi 0, %s22
      %s25 = sphi 0, %s23
      %s35 = sphi 0, %s37
      %s38 = sphi 0, %s35
      %s39 = sphi 0, %s38
      %s55 = sphi 0, %s39
      %s61 = sphi 0, %s63
      %s64 = sphi 0, %s61
      %s65 = sphi 0, %s64
      %s81 = sphi 0, %s65
      %s87 = sphi 0, %s89
      %s90 = sphi 0, %s87
      %s91 = sphi 0, %s90
      %s107 = sphi 0, %s91
    $region4: #{tpu_custom_call.1} parent=1 // loop_header_branch
      %16 = sbr.rel (%p14) target = $region8
    $region5: #{tpu_custom_call.1} parent=1 // loop_body
      %s18 = ssub.s32 %s13, 1
      %s19 = ssub.s32 %s13, 2
      %s26 = sadd.s32 1, %s21
      %p27 = scmp.ge.s32.totalorder %s26, 4
      %s28 = scalar_select %p27, 0, %s26
      %s29 = sadd.s32 1, %s20
      %s30 = scalar_select %p27, %s29, %s20
      %p31 = scmp.ge.s32.totalorder %s30, 1
      %s32 = scalar_select %p31, 0, %s30
      %s33 = ssub.s32 %s20, %s32
      %p34 = scmp.eq.s32.totalorder %s33, 0
      %s36 = sadd.s32 %s35, 1
      %s37 = scalar_select %p34, %s35, %s36
      %p40 = pneg %p34
      %p41 = scmp.eq.s32.totalorder %s13, 3
      %p42 = por %p40, %p41
      %p43 = scmp.ne.s32.totalorder %s35, %s38
      %p44 = scmp.eq.s32.totalorder %s13, 0
      %p45 = por %p43, %p44
      %p46 = scmp.ne.s32.totalorder %s35, %s38
      %p47 = scmp.eq.s32.totalorder %s18, 3
      %p48 = por %p46, %p47
      %p49 = scmp.ne.s32.totalorder %s38, %s39
      %p50 = scmp.eq.s32.totalorder %s18, 0
      %p51 = por %p49, %p50
      %p52 = scmp.ne.s32.totalorder %s38, %s39
      %p53 = scmp.eq.s32.totalorder %s19, 3
      %p54 = por %p52, %p53
      %p56 = scmp.ne.s32.totalorder %s39, %s55
      %p57 = scmp.eq.s32.totalorder %s19, 0
      %p58 = por %p56, %p57
      %s59 = ssub.s32 %s21, %s28
      %p60 = scmp.eq.s32.totalorder %s59, 0
      %s62 = sadd.s32 %s61, 1
      %s63 = scalar_select %p60, %s61, %s62
      %p66 = pneg %p60
      %p67 = scmp.eq.s32.totalorder %s13, 3
      %p68 = por %p66, %p67
      %p69 = scmp.ne.s32.totalorder %s61, %s64
      %p70 = scmp.eq.s32.totalorder %s13, 0
      %p71 = por %p69, %p70
      %p72 = scmp.ne.s32.totalorder %s61, %s64
      %p73 = scmp.eq.s32.totalorder %s18, 3
      %p74 = por %p72, %p73
      %p75 = scmp.ne.s32.totalorder %s64, %s65
      %p76 = scmp.eq.s32.totalorder %s18, 0
      %p77 = por %p75, %p76
      %p78 = scmp.ne.s32.totalorder %s64, %s65
      %p79 = scmp.eq.s32.totalorder %s19, 3
      %p80 = por %p78, %p79
      %p82 = scmp.ne.s32.totalorder %s65, %s81
      %p83 = scmp.eq.s32.totalorder %s19, 0
      %p84 = por %p82, %p83
      %s85 = ssub.s32 %s20, %s32
      %p86 = scmp.eq.s32.totalorder %s85, 0
      %s88 = sadd.s32 %s87, 1
      %s89 = scalar_select %p86, %s87, %s88
      %p92 = pneg %p86
      %p93 = scmp.eq.s32.totalorder %s13, 3
      %p94 = por %p92, %p93
      %p95 = scmp.ne.s32.totalorder %s87, %s90
      %p96 = scmp.eq.s32.totalorder %s13, 0
      %p97 = por %p95, %p96
      %p98 = scmp.ne.s32.totalorder %s87, %s90
      %p99 = scmp.eq.s32.totalorder %s18, 3
      %p100 = por %p98, %p99
      %p101 = scmp.ne.s32.totalorder %s90, %s91
      %p102 = scmp.eq.s32.totalorder %s18, 0
      %p103 = por %p101, %p102
      %p104 = scmp.ne.s32.totalorder %s90, %s91
      %p105 = scmp.eq.s32.totalorder %s19, 3
      %p106 = por %p104, %p105
      %p108 = scmp.ne.s32.totalorder %s91, %s107
      %p109 = scmp.eq.s32.totalorder %s19, 0
      %p110 = por %p108, %p109
      %p111 = scmp.le.s32.totalorder 1, %s13
      %p112 = scmp.lt.s32.totalorder %s13, 5
      %p113 = pnand %p111, %p112
      %p114 = pneg %p113
      // Predicated region
      $region9: #{tpu_custom_call.1} parent=5 // pred_check
        _
      $region10: #{tpu_custom_call.1} parent=5 // pred_check_branch
        %116 = sbr.rel (%p113) target = $region12
      $region11: #{tpu_custom_call.1} parent=5 // pred_region
        %s117 = ssub.s32 %s13, 1
        // Predicated region
        $region13: #{tpu_custom_call.1} parent=11 // pred_check
          %p118 = pneg %p51
        $region14: #{tpu_custom_call.1} parent=11 // pred_check_branch
          %120 = sbr.rel (%p118) target = $region16
        $region15: #{tpu_custom_call.1} parent=11 // pred_region
          %s121 = smul.u32 4, %s22
          %s123 = ssub.s32 512, 512
          %124 = vsyncadd [#allocation4], %s123
          %s125 = smul.addr %s121, 128
          %s126 = scalar_lea.hbm %s0, %s125
          %s127 = sshll.u32 [#allocation3], 4
          %s128 = int_to_ptr.vmem [resolvable:$true] %s127
          %133 = dma.hbm_to_vmem [thread:$0]  %s126, 512, %s128, [#allocation4], 128, 128, 8
        $region16: #{tpu_custom_call.1} parent=11 // pred_fallthru
          _
      $region12: #{tpu_custom_call.1} parent=5 // pred_fallthru
        _
      %p134 = scmp.lt.s32.totalorder %s13, 4
      // Predicated region
      $region17: #{tpu_custom_call.1} parent=5 // pred_check
        %p135 = pneg %p134
      $region18: #{tpu_custom_call.1} parent=5 // pred_check_branch
        %137 = sbr.rel (%p135) target = $region20
      $region19: #{tpu_custom_call.1} parent=5 // pred_region
        // Predicated region
        $region21: #{tpu_custom_call.1} parent=19 // pred_check
          %p138 = pneg %p71
        $region22: #{tpu_custom_call.1} parent=19 // pred_check_branch
          %140 = sbr.rel (%p138) target = $region24
        $region23: #{tpu_custom_call.1} parent=19 // pred_region
          %s141 = sand.u32 %s61, 1
          %s142 = scalar_lea.sflag [#allocation7], %s141
          %s143 = sand.u32 %s61, 1
          %s144 = smul.addr %s143, 16
          %s145 = scalar_lea.vmem [#allocation6], %s144
          %s146 = smul.u32 2, %s21
          %s148 = ssub.s32 256, 256
          %149 = vsyncadd %s142, %s148
          %s150 = smul.addr %s146, 128
          %s151 = scalar_lea.hbm %s1, %s150
          %s152 = sshll.u32 %s145, 4
          %s153 = int_to_ptr.vmem [resolvable:$true] %s152
          %158 = dma.hbm_to_vmem [thread:$0]  %s151, 256, %s153, %s142, 128, 128, 8
        $region24: #{tpu_custom_call.1} parent=19 // pred_fallthru
          _
      $region20: #{tpu_custom_call.1} parent=5 // pred_fallthru
        _
      %p159 = scmp.le.s32.totalorder 1, %s13
      %p160 = scmp.lt.s32.totalorder %s13, 5
      %p161 = pnand %p159, %p160
      %p162 = pneg %p161
      // Predicated region
      $region25: #{tpu_custom_call.1} parent=5 // pred_check
        _
      $region26: #{tpu_custom_call.1} parent=5 // pred_check_branch
        %164 = sbr.rel (%p161) target = $region28
      $region27: #{tpu_custom_call.1} parent=5 // pred_region
        %s165 = ssub.s32 %s13, 1
        // Predicated region
        $region29: #{tpu_custom_call.1} parent=27 // pred_check
          %p166 = pneg %p51
        $region30: #{tpu_custom_call.1} parent=27 // pred_check_branch
          %168 = sbr.rel (%p166) target = $region32
        $region31: #{tpu_custom_call.1} parent=27 // pred_region
          %169 = dma.done [#allocation4], 512
        $region32: #{tpu_custom_call.1} parent=27 // pred_fallthru
          _
        %s170 = sand.u32 %s64, 1
        %s171 = scalar_lea.sflag [#allocation7], %s170
        %s172 = sand.u32 %s64, 1
        %s173 = smul.addr %s172, 16
        %s174 = scalar_lea.vmem [#allocation6], %s173
        // Predicated region
        $region33: #{tpu_custom_call.1} parent=27 // pred_check
          %p175 = pneg %p77
        $region34: #{tpu_custom_call.1} parent=27 // pred_check_branch
          %177 = sbr.rel (%p175) target = $region36
        $region35: #{tpu_custom_call.1} parent=27 // pred_region
          %178 = dma.done %s171, 256
        $region36: #{tpu_custom_call.1} parent=27 // pred_fallthru
          _
        %p179 = pneg %p51
        %p180 = pneg %p48
        %s181 = sand.u32 %s64, 1
        %s182 = scalar_lea.sflag [#allocation7], %s181
        %s183 = sand.u32 %s64, 1
        %s184 = smul.addr %s183, 16
        %s185 = scalar_lea.vmem [#allocation6], %s184
        %p186 = pneg %p77
        %p187 = pneg %p74
        %p188 = pneg %p103
        %p189 = pneg %p100
        %s190 = smul.u32 4, %s22
        %s191 = smul.u32 2, %s23
        %p192 = scmp.eq.s32.totalorder %s23, 0
        // Predicated region
        $region37: #{tpu_custom_call.1} parent=27 // pred_check
          %p193 = pneg %p192
        $region38: #{tpu_custom_call.1} parent=27 // pred_check_branch
          %195 = sbr.rel (%p193) target = $region40
        $region39: #{tpu_custom_call.1} parent=27 // pred_region
          %vm196 = vcmask 31744
          %197 = vst.msk [vmem:[#allocation2] sm:$0xff] %vm196, 0.0
          %198 = vst.msk [vmem:[#allocation2 + $0x8] sm:$0xff] %vm196, 0.0
          %199 = vst.msk [vmem:[#allocation2 + $0x10] sm:$0xff] %vm196, 0.0
          %200 = vst.msk [vmem:[#allocation2 + $0x18] sm:$0xff] %vm196, 0.0
        $region40: #{tpu_custom_call.1} parent=27 // pred_fallthru
          _
        %v201 = vld [vmem:[#allocation3] sm:$0xff]
        %v202 = vld [vmem:[#allocation3 + $0x8] sm:$0xff]
        %v203 = vld [vmem:[#allocation3 + $0x10] sm:$0xff]
        %v204 = vld [vmem:[#allocation3 + $0x18] sm:$0xff]
        %v205 = vld [vmem:[%s174] sm:$0xff]
        %v206 = vld [vmem:[%s174 + $0x8] sm:$0xff]
        %207 = vmatprep.subr.mxu0 0.0
        %208 = vmatpush1.xpose.msra.mxu0 0.0
        %209 = vmatprep.subr.mxu0 0.0
        %210 = vmatpush1.xpose.msra.mxu0 0.0
        %211 = vmatprep.subr.mxu0 0.0
        %212 = vmatpush1.xpose.msra.mxu0 0.0
        %213 = vmatprep.subr.mxu0 0.0
        %214 = vmatpush1.xpose.msra.mxu0 0.0
        %215 = vmatprep.subr.mxu0 0.0
        %216 = vmatpush1.xpose.msra.mxu0 0.0
        %217 = vmatprep.subr.mxu0 0.0
        %218 = vmatpush1.xpose.msra.mxu0 0.0
        %219 = vmatprep.subr.mxu0 0.0
        %220 = vmatpush1.xpose.msra.mxu0 0.0
        %221 = vmatprep.subr.mxu0 0.0
        %222 = vmatpush1.xpose.msra.mxu0 0.0
        %223 = vmatprep.subr.mxu0 0.0
        %224 = vmatpush1.xpose.msra.mxu0 0.0
        %225 = vmatprep.subr.mxu0 0.0
        %226 = vmatpush1.xpose.msra.mxu0 0.0
        %227 = vmatprep.subr.mxu0 0.0
        %228 = vmatpush1.xpose.msra.mxu0 0.0
        %229 = vmatprep.subr.mxu0 0.0
        %230 = vmatpush1.xpose.msra.mxu0 0.0
        %231 = vmatprep.subr.mxu0 0.0
        %232 = vmatpush1.xpose.msra.mxu0 0.0
        %233 = vmatprep.subr.mxu0 0.0
        %234 = vmatpush1.xpose.msra.mxu0 0.0
        %235 = vmatprep.subr.mxu0 0.0
        %236 = vmatpush1.xpose.msra.mxu0 %v206
        %237 = vmatprep.subr.mxu0 0.0
        %238 = vmatpush1.xpose.msra.mxu0 %v205
        %239 = vmatprep.subr.mxu0 0.0
        %240 = vmatpush2.xpose.msra.mxu0 0.0
        %241 = vmatprep.subr.mxu0 0.0
        %242 = vmatpush2.xpose.msra.mxu0 0.0
        %243 = vmatprep.subr.mxu0 0.0
        %244 = vmatpush2.xpose.msra.mxu0 0.0
        %245 = vmatprep.subr.mxu0 0.0
        %246 = vmatpush2.xpose.msra.mxu0 0.0
        %247 = vmatprep.subr.mxu0 0.0
        %248 = vmatpush2.xpose.msra.mxu0 0.0
        %249 = vmatprep.subr.mxu0 0.0
        %250 = vmatpush2.xpose.msra.mxu0 0.0
        %251 = vmatprep.subr.mxu0 0.0
        %252 = vmatpush2.xpose.msra.mxu0 0.0
        %253 = vmatprep.subr.mxu0 0.0
        %254 = vmatpush2.xpose.msra.mxu0 0.0
        %255 = vmatprep.subr.mxu0 0.0
        %256 = vmatpush2.xpose.msra.mxu0 0.0
        %257 = vmatprep.subr.mxu0 0.0
        %258 = vmatpush2.xpose.msra.mxu0 0.0
        %259 = vmatprep.subr.mxu0 0.0
        %260 = vmatpush2.xpose.msra.mxu0 0.0
        %261 = vmatprep.subr.mxu0 0.0
        %262 = vmatpush2.xpose.msra.mxu0 0.0
        %263 = vmatprep.subr.mxu0 0.0
        %264 = vmatpush2.xpose.msra.mxu0 0.0
        %265 = vmatprep.subr.mxu0 0.0
        %266 = vmatpush2.xpose.msra.mxu0 0.0
        %267 = vmatprep.subr.mxu0 0.0
        %268 = vmatpush2.xpose.msra.mxu0 0.0
        %269 = vmatprep.subr.mxu0 0.0
        %270 = vmatpush2.xpose.msra.mxu0 0.0
        %271 = vmatprep.mubr.f32.mxu0 0.0
        %272 = vmatmul.mubr.f32.gmra.mxu0 %v201
        %v273 = vpop.f32.mrf.mxu0
        %v274 = vadd.f32 0.0, %v273
        %v275 = vpop.f32.mrf.mxu0
        %276 = vmatprep.mubr.f32.mxu0 0.0
        %277 = vmatmul.mubr.f32.gmra.mxu0 %v202
        %v278 = vpop.f32.mrf.mxu0
        %v279 = vadd.f32 0.0, %v278
        %v280 = vpop.f32.mrf.mxu0
        %281 = vmatprep.mubr.f32.mxu0 0.0
        %282 = vmatmul.mubr.f32.gmra.mxu0 %v203
        %v283 = vpop.f32.mrf.mxu0
        %v284 = vadd.f32 0.0, %v283
        %v285 = vpop.f32.mrf.mxu0
        %286 = vmatprep.mubr.f32.mxu0 0.0
        %287 = vmatmul.mubr.f32.gmra.mxu0 %v204
        %v288 = vpop.f32.mrf.mxu0
        %v289 = vadd.f32 0.0, %v288
        %v290 = vpop.f32.mrf.mxu0
        %291 = vdwg.mxu0
        %vm292 = vcmask 130048
        %v293 = vsel %vm292, %v274, -inf
        %294 = vmax.xlane.f32.xlu0 %v293
        %v295 = vpop.xlane.xlu0 %294
        %v296 = vsel %vm292, %v279, -inf
        %297 = vmax.xlane.f32.xlu0 %v296
        %v298 = vpop.xlane.xlu0 %297
        %v299 = vsel %vm292, %v284, -inf
        %300 = vmax.xlane.f32.xlu0 %v299
        %v301 = vpop.xlane.xlu0 %300
        %v302 = vsel %vm292, %v289, -inf
        %303 = vmax.xlane.f32.xlu0 %v302
        %v304 = vpop.xlane.xlu0 %303
        %v305 = vlaneseq
        %v306 = vand.u32 %v305, 127
        %v307 = vstv %s23
        %vm308 = vcmp.eq.s32.totalorder %v306, %v307
        %v309 = vld [vmem:[#allocation2] sm:$0xff]
        %v310 = vld [vmem:[#allocation2 + $0x8] sm:$0xff]
        %v311 = vld [vmem:[#allocation2 + $0x10] sm:$0xff]
        %v312 = vld [vmem:[#allocation2 + $0x18] sm:$0xff]
        %v313 = vsel %vm308, %v295, %v309
        %v314 = vsel %vm308, %v298, %v310
        %v315 = vsel %vm308, %v301, %v311
        %v316 = vsel %vm308, %v304, %v312
        %vm317 = vcmask 31744
        %318 = vst.msk [vmem:[#allocation2] sm:$0xff] %vm317, %v313
        %319 = vst.msk [vmem:[#allocation2 + $0x8] sm:$0xff] %vm317, %v314
        %320 = vst.msk [vmem:[#allocation2 + $0x10] sm:$0xff] %vm317, %v315
        %321 = vst.msk [vmem:[#allocation2 + $0x18] sm:$0xff] %vm317, %v316
        %p322 = scmp.eq.s32.totalorder %s23, 3
        // Predicated region
        $region41: #{tpu_custom_call.1} parent=27 // pred_check
          %p323 = pneg %p322
        $region42: #{tpu_custom_call.1} parent=27 // pred_check_branch
          %325 = sbr.rel (%p323) target = $region44
        $region43: #{tpu_custom_call.1} parent=27 // pred_region
          %v326 = vld [vmem:[#allocation2] sm:$0xff]
          %v327 = vld [vmem:[#allocation2 + $0x8] sm:$0xff]
          %v328 = vld [vmem:[#allocation2 + $0x10] sm:$0xff]
          %v329 = vld [vmem:[#allocation2 + $0x18] sm:$0xff]
          %v330 = vsel %vm317, %v326, 0.0
          %v331 = vrot.slane %v330, 4
          %v332 = vadd.f32 %v330, %v331
          %v333 = vrot.slane %v332, 2
          %v334 = vadd.f32 %v332, %v333
          %v335 = vrot.slane %v334, 1
          %v336 = vadd.f32 %v334, %v335
          %v337 = vsel %vm317, %v327, 0.0
          %v338 = vrot.slane %v337, 4
          %v339 = vadd.f32 %v337, %v338
          %v340 = vrot.slane %v339, 2
          %v341 = vadd.f32 %v339, %v340
          %v342 = vrot.slane %v341, 1
          %v343 = vadd.f32 %v341, %v342
          %v344 = vsel %vm317, %v328, 0.0
          %v345 = vrot.slane %v344, 4
          %v346 = vadd.f32 %v344, %v345
          %v347 = vrot.slane %v346, 2
          %v348 = vadd.f32 %v346, %v347
          %v349 = vrot.slane %v348, 1
          %v350 = vadd.f32 %v348, %v349
          %v351 = vsel %vm317, %v329, 0.0
          %v352 = vrot.slane %v351, 4
          %v353 = vadd.f32 %v351, %v352
          %v354 = vrot.slane %v353, 2
          %v355 = vadd.f32 %v353, %v354
          %v356 = vrot.slane %v355, 1
          %v357 = vadd.f32 %v355, %v356
          %vm362 = vcmask 1041409
          %v363 = vsel %vm362, %v343, %v336
          %vm364 = vcmask 1042434
          %v365 = vsel %vm364, %v350, %v363
          %vm366 = vcmask 1043459
          %v367 = vsel %vm366, %v357, %v365
          %vm369 = vcmask 27648
          %370 = vst.msk [vmem:[#allocation8] sm:$0xf] %vm369, %v367
        $region44: #{tpu_custom_call.1} parent=27 // pred_fallthru
          _
        // Predicated region
        $region45: #{tpu_custom_call.1} parent=27 // pred_check
          %p371 = pneg %p100
        $region46: #{tpu_custom_call.1} parent=27 // pred_check_branch
          %373 = sbr.rel (%p371) target = $region48
        $region47: #{tpu_custom_call.1} parent=27 // pred_region
          %s375 = ssub.s32 64, 64
          %376 = vsyncadd [#allocation5], %s375
          %s377 = smul.addr %s22, 64
          %s378 = scalar_lea.hbm %s2, %s377
          %s380 = sshll.u32 [#allocation8], 4
          %s381 = int_to_ptr.vmem [resolvable:$true] %s380
          %383 = dma.vmem_to_hbm [thread:$0]  %s381, 64, %s378, [#allocation5]
        $region48: #{tpu_custom_call.1} parent=27 // pred_fallthru
          _
        // Predicated region
        $region49: #{tpu_custom_call.1} parent=27 // pred_check
          %p384 = pneg %p100
        $region50: #{tpu_custom_call.1} parent=27 // pred_check_branch
          %386 = sbr.rel (%p384) target = $region52
        $region51: #{tpu_custom_call.1} parent=27 // pred_region
          %387 = dma.done [#allocation5], 64
        $region52: #{tpu_custom_call.1} parent=27 // pred_fallthru
          _
      $region28: #{tpu_custom_call.1} parent=5 // pred_fallthru
        _
      %p388 = scmp.le.s32.totalorder 2, %s13
      // Predicated region
      $region53: #{tpu_custom_call.1} parent=5 // pred_check
        %p389 = pneg %p388
      $region54: #{tpu_custom_call.1} parent=5 // pred_check_branch
        %391 = sbr.rel (%p389) target = $region56
      $region55: #{tpu_custom_call.1} parent=5 // pred_region
        %s392 = ssub.s32 %s13, 2
      $region56: #{tpu_custom_call.1} parent=5 // pred_fallthru
        _
    $region6: #{tpu_custom_call.1} parent=1 // loop_footer
      %s17 = sadd.s32 1, %s13
    $region7: #{tpu_custom_call.1} parent=1 // loop_footer_branch
      %12 = sbr.rel target = $region3
    $region8: #{tpu_custom_call.1} parent=1 // loop_exit
      _
    %393 = vsyncpa [#allocation4], 1
    %s394 = scalar_lea.sflag [#allocation4], 1
    %395 = vsyncpa %s394, 1
    %396 = vsyncpa [#allocation7], 1
    %s397 = scalar_lea.sflag [#allocation7], 1
    %398 = vsyncpa %s397, 1
    %399 = vsyncpa [#allocation5], 1
    %s400 = scalar_lea.sflag [#allocation5], 1
    %401 = vsyncpa %s400, 1

</llo_original>
